<compile_context>
chip_gen: v5e
topology: v5e:2x2
jax: 0.10.0
libtpu: 0.0.40
codegen_flags: <defaults>
</compile_context>

<pallas_src>
import math
from functools import partial

import jax
import jax.numpy as jnp
from jax.experimental import pallas as pl
from jax.experimental.pallas import tpu as pltpu


def _round_up(x, m):
    return ((x + m - 1) // m) * m


def _pad2d(x, rows, cols):
    r, c = x.shape
    if r == rows and c == cols:
        return x
    return jnp.pad(x, ((0, rows - r), (0, cols - c)))


def _matmul_kernel(a_ref, b_ref, o_ref, acc_ref):
    @pl.when(pl.program_id(2) == 0)
    def _init():
        acc_ref[...] = jnp.zeros_like(acc_ref)

    acc_ref[...] += jnp.dot(a_ref[...], b_ref[...],
                            preferred_element_type=jnp.float32)

    @pl.when(pl.program_id(2) == pl.num_programs(2) - 1)
    def _store():
        o_ref[...] = acc_ref[...].astype(o_ref.dtype)


def _matmul_bias_kernel(a_ref, b_ref, bias_ref, o_ref, acc_ref):
    @pl.when(pl.program_id(2) == 0)
    def _init():
        acc_ref[...] = jnp.zeros_like(acc_ref)

    acc_ref[...] += jnp.dot(a_ref[...], b_ref[...],
                            preferred_element_type=jnp.float32)

    @pl.when(pl.program_id(2) == pl.num_programs(2) - 1)
    def _store():
        # f32 epilogue (bias add) — avoids bf16 VPU ops (v5e has none).
        o_ref[...] = (acc_ref[...] + bias_ref[...]).astype(o_ref.dtype)


def _tiled_matmul(a, b, bias=None, *, out_dtype=jnp.float32,
                  tm=256, tn=512, tk=512):
    """out = a @ b (+ bias), tiled over grid (M/tm, N/tn, K/tk) with f32 acc."""
    m, k = a.shape
    k2, n = b.shape
    assert k == k2, (a.shape, b.shape)

    # Clamp tiles to the (padded) problem size; keep (8, 128) alignment.
    tm = min(tm, _round_up(m, 8))
    tn = min(tn, _round_up(n, 128))
    tk = min(tk, _round_up(k, 128))

    mp = _round_up(m, tm)
    kp = _round_up(k, tk)
    np_ = _round_up(n, tn)

    a_p = _pad2d(a, mp, kp)
    b_p = _pad2d(b, kp, np_)

    grid = (mp // tm, np_ // tn, kp // tk)

    in_specs = [
        pl.BlockSpec((tm, tk), lambda i, j, kk: (i, kk)),
        pl.BlockSpec((tk, tn), lambda i, j, kk: (kk, j)),
    ]
    operands = [a_p, b_p]
    if bias is not None:
        bias_p = _pad2d(bias.reshape(1, n).astype(jnp.float32), 1, np_)
        in_specs.append(pl.BlockSpec((1, tn), lambda i, j, kk: (0, j)))
        operands.append(bias_p)
        kernel = _matmul_bias_kernel
    else:
        kernel = _matmul_kernel

    out_bytes = mp * np_ * jnp.dtype(out_dtype).itemsize
    bytes_accessed = (a_p.size * a_p.dtype.itemsize * (np_ // tn)
                      + b_p.size * b_p.dtype.itemsize * (mp // tm)
                      + out_bytes)
    cost = pl.CostEstimate(flops=2 * mp * kp * np_, transcendentals=0,
                           bytes_accessed=bytes_accessed)

    out = pl.pallas_call(
        kernel,
        out_shape=jax.ShapeDtypeStruct((mp, np_), out_dtype),
        grid_spec=pltpu.PrefetchScalarGridSpec(
            num_scalar_prefetch=0,
            grid=grid,
            in_specs=in_specs,
            out_specs=pl.BlockSpec((tm, tn), lambda i, j, kk: (i, j)),
            scratch_shapes=[pltpu.VMEM((tm, tn), jnp.float32)],
        ),
        compiler_params=pltpu.CompilerParams(
            dimension_semantics=("parallel", "parallel", "arbitrary"),
            vmem_limit_bytes=48 * 1024 * 1024,
        ),
        cost_estimate=cost,
    )(*operands)

    return out[:m, :n]


@partial(jax.jit, static_argnames=("use_bf16",))
def graph_convolution(x, weight, adj, bias=None, *, use_bf16=True):
    """Pallas GCN forward: adj @ (x @ weight) [+ bias]."""
    # Stage 1: support = X @ W. Small ((N, out)), computed once in f32 and
    # materialized so the hot adj-matmul never recomputes it.
    support_dtype = jnp.bfloat16 if use_bf16 else jnp.float32
    support = _tiled_matmul(x.astype(jnp.float32), weight.astype(jnp.float32),
                            out_dtype=support_dtype)

    # Stage 2: output = adj @ support (+ bias). bf16 MXU inputs, f32 accumulate.
    adj_in = adj.astype(jnp.bfloat16) if use_bf16 else adj.astype(jnp.float32)
    return _tiled_matmul(adj_in, support, bias=bias, out_dtype=jnp.float32,
                         tm=256, tn=512, tk=512)


def init_params(key, in_features, out_features, bias=True):
    """Deterministic init mirroring reset_parameters(): U(-stdv, stdv)."""
    stdv = 1.0 / math.sqrt(out_features)
    k_w, k_b = jax.random.split(key)
    weight = jax.random.uniform(
        k_w, (in_features, out_features), jnp.float32, -stdv, stdv)
    b = (jax.random.uniform(k_b, (out_features,), jnp.float32, -stdv, stdv)
         if bias else None)
    return weight, b


def _make_graph(kx, ka, n, fin):
    x = jax.random.normal(kx, (n, fin), jnp.float32)
    a = (jax.random.uniform(ka, (n, n)) < 0.3).astype(jnp.float32)
    a = jnp.maximum(a, a.T) + jnp.eye(n, dtype=jnp.float32)
    adj = a / jnp.sum(a, axis=1, keepdims=True)
    return x, adj


if __name__ == "__main__":
    key = jax.random.PRNGKey(0)
    k_x, k_adj, k_params = jax.random.split(key, 3)

    # Case 1: tiny graph (single tile) — matches original module demo shapes.
    n1, fin1, fout1 = 16, 32, 64
    x1, adj1 = _make_graph(k_x, k_adj, n1, fin1)
    w1, b1 = init_params(k_params, fin1, fout1, bias=True)

    out1 = graph_convolution(x1, w1, adj1, b1)
    jax.block_until_ready(out1)
    ref1 = adj1 @ (x1 @ w1) + b1[None, :]
    assert out1.shape == (n1, fout1)
    assert jnp.allclose(out1, ref1, atol=2e-2, rtol=2e-2), \
        float(jnp.max(jnp.abs(out1 - ref1)))

    # bias=None path (Python-level branch, no zeros array).
    out1_nb = graph_convolution(x1, w1, adj1, None)
    jax.block_until_ready(out1_nb)
    ref1_nb = adj1 @ (x1 @ w1)
    assert jnp.allclose(out1_nb, ref1_nb, atol=2e-2, rtol=2e-2)

    # Case 2: larger graph exercising multi-block grid, K-accumulation and
    # padding of a non-128-multiple out_features.
    k_x2, k_adj2, k_p2 = jax.random.split(jax.random.PRNGKey(1), 3)
    n2, fin2, fout2 = 640, 96, 200
    x2, adj2 = _make_graph(k_x2, k_adj2, n2, fin2)
    w2, b2 = init_params(k_p2, fin2, fout2, bias=True)

    out2 = graph_convolution(x2, w2, adj2, b2)
    jax.block_until_ready(out2)
    ref2 = adj2 @ (x2 @ w2) + b2[None, :]
    assert out2.shape == (n2, fout2)
    assert jnp.allclose(out2, ref2, atol=2e-2, rtol=2e-2), \
        float(jnp.max(jnp.abs(out2 - ref2)))

    print("KERNEL_OK")
</pallas_src>

<mosaic_0001>
module attributes {stable_mosaic.version = 11 : i64} {
  func.func @_matmul_kernel(%arg0: i32, %arg1: i32, %arg2: i32, %arg3: memref<16x128xf32, #tpu.memory_space<vmem>>, %arg4: memref<128x128xf32, #tpu.memory_space<vmem>>, %arg5: memref<16x128xbf16, #tpu.memory_space<vmem>>, %arg6: memref<16x128xf32, #tpu.memory_space<vmem>>) attributes {dimension_semantics = [#tpu.dimension_semantics<parallel>, #tpu.dimension_semantics<parallel>, #tpu.dimension_semantics<arbitrary>], iteration_bounds = array<i64: 1, 1, 1>, scalar_prefetch = 0 : i64, scratch_operands = 1 : i64, tpu.core_type = #tpu.core_type<tc>, window_params = [{transform_indices = @transform_0, window_bounds = array<i64: 16, 128>}, {transform_indices = @transform_1, window_bounds = array<i64: 128, 128>}, {transform_indices = @transform_2, window_bounds = array<i64: 16, 128>}]} {
    %c0_i32 = arith.constant 0 : i32
    %0 = arith.cmpi eq, %arg2, %c0_i32 : i32
    %1 = arith.extui %0 : i1 to i32
    %c0_i32_0 = arith.constant 0 : i32
    %2 = arith.cmpi ne, %1, %c0_i32_0 : i32
    scf.if %2 {
      %cst_10 = arith.constant 0.000000e+00 : f32
      %12 = vector.broadcast %cst_10 : f32 to vector<16x128xf32>
      %c0_11 = arith.constant 0 : index
      %c0_12 = arith.constant 0 : index
      %13 = vector.load %arg6[%c0_11, %c0_12] : memref<16x128xf32, #tpu.memory_space<vmem>>, vector<16x128xf32>
      tpu.vector_store %arg6[%c0_11, %c0_12], %12 {strides = array<i32>} : memref<16x128xf32, #tpu.memory_space<vmem>>, vector<16x128xf32>,
    } else {
    }
    %c0 = arith.constant 0 : index
    %c0_1 = arith.constant 0 : index
    %3 = vector.load %arg6[%c0, %c0_1] : memref<16x128xf32, #tpu.memory_space<vmem>>, vector<16x128xf32>
    %c0_2 = arith.constant 0 : index
    %c0_3 = arith.constant 0 : index
    %4 = vector.load %arg3[%c0_2, %c0_3] : memref<16x128xf32, #tpu.memory_space<vmem>>, vector<16x128xf32>
    %c0_4 = arith.constant 0 : index
    %c0_5 = arith.constant 0 : index
    %5 = vector.load %arg4[%c0_4, %c0_5] : memref<128x128xf32, #tpu.memory_space<vmem>>, vector<128x128xf32>
    %cst = arith.constant dense<0.000000e+00> : vector<16x128xf32>
    %6 = tpu.matmul %4, %5, %cst {dimension_numbers = #tpu.dot_dimension_numbers<[1], [0], [0], [1], [0, 0, 1, 1], [], []>} : vector<16x128xf32>, vector<128x128xf32>, vector<16x128xf32> -> vector<16x128xf32>
    %7 = arith.addf %3, %6 : vector<16x128xf32>
    %c0_6 = arith.constant 0 : index
    %c0_7 = arith.constant 0 : index
    %8 = vector.load %arg6[%c0_6, %c0_7] : memref<16x128xf32, #tpu.memory_space<vmem>>, vector<16x128xf32>
    tpu.vector_store %arg6[%c0_6, %c0_7], %7 {strides = array<i32>} : memref<16x128xf32, #tpu.memory_space<vmem>>, vector<16x128xf32>,
    %c0_i32_8 = arith.constant 0 : i32
    %9 = arith.cmpi eq, %arg2, %c0_i32_8 : i32
    %10 = arith.extui %9 : i1 to i32
    %c0_i32_9 = arith.constant 0 : i32
    %11 = arith.cmpi ne, %10, %c0_i32_9 : i32
    scf.if %11 {
      %c0_10 = arith.constant 0 : index
      %c0_11 = arith.constant 0 : index
      %12 = vector.load %arg6[%c0_10, %c0_11] : memref<16x128xf32, #tpu.memory_space<vmem>>, vector<16x128xf32>
      %13 = arith.truncf %12 : vector<16x128xf32> to vector<16x128xbf16>
      %c0_12 = arith.constant 0 : index
      %c0_13 = arith.constant 0 : index
      %14 = vector.load %arg5[%c0_12, %c0_13] : memref<16x128xbf16, #tpu.memory_space<vmem>>, vector<16x128xbf16>
      tpu.vector_store %arg5[%c0_12, %c0_13], %13 {strides = array<i32>} : memref<16x128xbf16, #tpu.memory_space<vmem>>, vector<16x128xbf16>,
    } else {
    }
    return
  }
  func.func @transform_0(%arg0: i32, %arg1: i32, %arg2: i32) -> (i32, i32) {
    %c0_i32 = arith.constant 0 : i32
    return %arg0, %arg2 : i32, i32
  }
  func.func @transform_1(%arg0: i32, %arg1: i32, %arg2: i32) -> (i32, i32) {
    %c0_i32 = arith.constant 0 : i32
    return %arg2, %arg1 : i32, i32
  }
  func.func @transform_2(%arg0: i32, %arg1: i32, %arg2: i32) -> (i32, i32) {
    %c0_i32 = arith.constant 0 : i32
    return %arg0, %arg1 : i32, i32
  }
}

module attributes {stable_mosaic.version = 11 : i64} {
  func.func @_matmul_bias_kernel(%arg0: i32, %arg1: i32, %arg2: i32, %arg3: memref<16x128xbf16, #tpu.memory_space<vmem>>, %arg4: memref<128x128xbf16, #tpu.memory_space<vmem>>, %arg5: memref<1x128xf32, #tpu.memory_space<vmem>>, %arg6: memref<16x128xf32, #tpu.memory_space<vmem>>, %arg7: memref<16x128xf32, #tpu.memory_space<vmem>>) attributes {dimension_semantics = [#tpu.dimension_semantics<parallel>, #tpu.dimension_semantics<parallel>, #tpu.dimension_semantics<arbitrary>], iteration_bounds = array<i64: 1, 1, 1>, scalar_prefetch = 0 : i64, scratch_operands = 1 : i64, tpu.core_type = #tpu.core_type<tc>, window_params = [{transform_indices = @transform_0, window_bounds = array<i64: 16, 128>}, {transform_indices = @transform_1, window_bounds = array<i64: 128, 128>}, {transform_indices = @transform_2, window_bounds = array<i64: 1, 128>}, {transform_indices = @transform_3, window_bounds = array<i64: 16, 128>}]} {
    %c0_i32 = arith.constant 0 : i32
    %0 = arith.cmpi eq, %arg2, %c0_i32 : i32
    %1 = arith.extui %0 : i1 to i32
    %c0_i32_0 = arith.constant 0 : i32
    %2 = arith.cmpi ne, %1, %c0_i32_0 : i32
    scf.if %2 {
      %cst_10 = arith.constant 0.000000e+00 : f32
      %12 = vector.broadcast %cst_10 : f32 to vector<16x128xf32>
      %c0_11 = arith.constant 0 : index
      %c0_12 = arith.constant 0 : index
      %13 = vector.load %arg7[%c0_11, %c0_12] : memref<16x128xf32, #tpu.memory_space<vmem>>, vector<16x128xf32>
      tpu.vector_store %arg7[%c0_11, %c0_12], %12 {strides = array<i32>} : memref<16x128xf32, #tpu.memory_space<vmem>>, vector<16x128xf32>,
    } else {
    }
    %c0 = arith.constant 0 : index
    %c0_1 = arith.constant 0 : index
    %3 = vector.load %arg7[%c0, %c0_1] : memref<16x128xf32, #tpu.memory_space<vmem>>, vector<16x128xf32>
    %c0_2 = arith.constant 0 : index
    %c0_3 = arith.constant 0 : index
    %4 = vector.load %arg3[%c0_2, %c0_3] : memref<16x128xbf16, #tpu.memory_space<vmem>>, vector<16x128xbf16>
    %c0_4 = arith.constant 0 : index
    %c0_5 = arith.constant 0 : index
    %5 = vector.load %arg4[%c0_4, %c0_5] : memref<128x128xbf16, #tpu.memory_space<vmem>>, vector<128x128xbf16>
    %cst = arith.constant dense<0.000000e+00> : vector<16x128xf32>
    %6 = tpu.matmul %4, %5, %cst {dimension_numbers = #tpu.dot_dimension_numbers<[1], [0], [0], [1], [0, 0, 1, 1], [], []>} : vector<16x128xbf16>, vector<128x128xbf16>, vector<16x128xf32> -> vector<16x128xf32>
    %7 = arith.addf %3, %6 : vector<16x128xf32>
    %c0_6 = arith.constant 0 : index
    %c0_7 = arith.constant 0 : index
    %8 = vector.load %arg7[%c0_6, %c0_7] : memref<16x128xf32, #tpu.memory_space<vmem>>, vector<16x128xf32>
    tpu.vector_store %arg7[%c0_6, %c0_7], %7 {strides = array<i32>} : memref<16x128xf32, #tpu.memory_space<vmem>>, vector<16x128xf32>,
    %c0_i32_8 = arith.constant 0 : i32
    %9 = arith.cmpi eq, %arg2, %c0_i32_8 : i32
    %10 = arith.extui %9 : i1 to i32
    %c0_i32_9 = arith.constant 0 : i32
    %11 = arith.cmpi ne, %10, %c0_i32_9 : i32
    scf.if %11 {
      %c0_10 = arith.constant 0 : index
      %c0_11 = arith.constant 0 : index
      %12 = vector.load %arg7[%c0_10, %c0_11] : memref<16x128xf32, #tpu.memory_space<vmem>>, vector<16x128xf32>
      %c0_12 = arith.constant 0 : index
      %c0_13 = arith.constant 0 : index
      %13 = vector.load %arg5[%c0_12, %c0_13] : memref<1x128xf32, #tpu.memory_space<vmem>>, vector<1x128xf32>
      %14 = vector.broadcast %13 : vector<1x128xf32> to vector<16x128xf32>
      %15 = arith.addf %12, %14 : vector<16x128xf32>
      %c0_14 = arith.constant 0 : index
      %c0_15 = arith.constant 0 : index
      %16 = vector.load %arg6[%c0_14, %c0_15] : memref<16x128xf32, #tpu.memory_space<vmem>>, vector<16x128xf32>
      tpu.vector_store %arg6[%c0_14, %c0_15], %15 {strides = array<i32>} : memref<16x128xf32, #tpu.memory_space<vmem>>, vector<16x128xf32>,
    } else {
    }
    return
  }
  func.func @transform_0(%arg0: i32, %arg1: i32, %arg2: i32) -> (i32, i32) {
    %c0_i32 = arith.constant 0 : i32
    return %arg0, %arg2 : i32, i32
  }
  func.func @transform_1(%arg0: i32, %arg1: i32, %arg2: i32) -> (i32, i32) {
    %c0_i32 = arith.constant 0 : i32
    return %arg2, %arg1 : i32, i32
  }
  func.func @transform_2(%arg0: i32, %arg1: i32, %arg2: i32) -> (i32, i32) {
    %c0_i32 = arith.constant 0 : i32
    %c0_i32_0 = arith.constant 0 : i32
    return %c0_i32, %arg1 : i32, i32
  }
  func.func @transform_3(%arg0: i32, %arg1: i32, %arg2: i32) -> (i32, i32) {
    %c0_i32 = arith.constant 0 : i32
    return %arg0, %arg1 : i32, i32
  }
}

</mosaic_0001>

<llo_original>
// kernel: graph_convolution.2
$region0: #{graph_convolution.2}
  #allocation0 [shape = 'u32[]', space=smem, size = 0x4, offset = 0x4, fixed_abs, tag = 'smem constant byte address 0x4 - core index']
  #allocation1 [shape = 'u32[72,128]{1,0:T(1,128)}', space=vmem, size = 0x9000, scoped, tag = 'internal scratch']
  #allocation2 [shape = 'f32[16,128]{1,0:T(8,128)}', space=vmem, size = 0x2000, scoped, tag = 'scratch operand']
  %s0 = inlined_call_operand.vmem [shape: f32[16,128], index: 0, kind: input, shape index: {}]
  %s1 = inlined_call_operand.vmem [shape: f32[128,128], index: 1, kind: input, shape index: {}]
  %s2 = inlined_call_operand.vmem [shape: bf16[16,128], index: 2, kind: output, shape index: {}]
  %s3 = sld [smem:[#allocation0]]
  $region26: #{graph_convolution.2} parent=0
    _
  %s5 = ssub.s32 1, %s3
  %s6 = scalar_select 0, %s5, %s3
  // Predicated region
  $region2: #{graph_convolution.2} parent=0 // pred_check
    _
  $region3: #{graph_convolution.2} parent=0 // pred_check_branch
    %8 = sbr.rel (0) target = $region5
  $region4: #{graph_convolution.2} parent=0 // pred_region
    _
  $region5: #{graph_convolution.2} parent=0 // pred_fallthru
    _
  // Predicated region
  $region6: #{graph_convolution.2} parent=0 // pred_check
    _
  $region7: #{graph_convolution.2} parent=0 // pred_check_branch
    %10 = sbr.rel (0) target = $region9
  $region8: #{graph_convolution.2} parent=0 // pred_region
    _
  $region9: #{graph_convolution.2} parent=0 // pred_fallthru
    _
  %p11 = scmp.eq.s32.totalorder 0, 0
  // Predicated region
  $region10: #{graph_convolution.2} parent=0 // pred_check
    %p12 = pneg %p11
  $region11: #{graph_convolution.2} parent=0 // pred_check_branch
    %14 = sbr.rel (%p12) target = $region13
  $region12: #{graph_convolution.2} parent=0 // pred_region
    %15 = vst [vmem:[#allocation2] sm:$0xff] 0.0
    %16 = vst [vmem:[#allocation2 + $0x8] sm:$0xff] 0.0
  $region13: #{graph_convolution.2} parent=0 // pred_fallthru
    _
  %v17 = vld [vmem:[#allocation2] sm:$0xff]
  %v18 = vld [vmem:[#allocation2 + $0x8] sm:$0xff]
  %v19 = vld [vmem:[%s0] sm:$0xff]
  %v20 = vld [vmem:[%s0 + $0x8] sm:$0xff]
  %v21 = vld [vmem:[%s1] sm:$0xff]
  %v22 = vld [vmem:[%s1 + $0x8] sm:$0xff]
  %v23 = vld [vmem:[%s1 + $0x10] sm:$0xff]
  %v24 = vld [vmem:[%s1 + $0x18] sm:$0xff]
  %v25 = vld [vmem:[%s1 + $0x20] sm:$0xff]
  %v26 = vld [vmem:[%s1 + $0x28] sm:$0xff]
  %v27 = vld [vmem:[%s1 + $0x30] sm:$0xff]
  %v28 = vld [vmem:[%s1 + $0x38] sm:$0xff]
  %v29 = vld [vmem:[%s1 + $0x40] sm:$0xff]
  %v30 = vld [vmem:[%s1 + $0x48] sm:$0xff]
  %v31 = vld [vmem:[%s1 + $0x50] sm:$0xff]
  %v32 = vld [vmem:[%s1 + $0x58] sm:$0xff]
  %v33 = vld [vmem:[%s1 + $0x60] sm:$0xff]
  %v34 = vld [vmem:[%s1 + $0x68] sm:$0xff]
  %v35 = vld [vmem:[%s1 + $0x70] sm:$0xff]
  %v36 = vld [vmem:[%s1 + $0x78] sm:$0xff]
  %37 = vmatpush.msra.mxu0 %v36
  %38 = vmatpush.msra.mxu0 %v35
  %39 = vmatpush.msra.mxu0 %v34
  %40 = vmatpush.msra.mxu0 %v33
  %41 = vmatpush.msra.mxu0 %v32
  %42 = vmatpush.msra.mxu0 %v31
  %43 = vmatpush.msra.mxu0 %v30
  %44 = vmatpush.msra.mxu0 %v29
  %45 = vmatpush.msra.mxu0 %v28
  %46 = vmatpush.msra.mxu0 %v27
  %47 = vmatpush.msra.mxu0 %v26
  %48 = vmatpush.msra.mxu0 %v25
  %49 = vmatpush.msra.mxu0 %v24
  %50 = vmatpush.msra.mxu0 %v23
  %51 = vmatpush.msra.mxu0 %v22
  %52 = vmatpush.msra.mxu0 %v21
  %53 = vmatmul.f32.gmra.mxu0 %v19
  %v54 = vpop.f32.mrf.mxu0
  %v55 = vadd.f32 0.0, %v54
  %56 = vmatmul.f32.gmra.mxu0 %v20
  %v57 = vpop.f32.mrf.mxu0
  %v58 = vadd.f32 0.0, %v57
  %59 = vdwg.mxu0
  %v60 = vadd.f32 %v17, %v55
  %v61 = vadd.f32 %v18, %v58
  %62 = vst [vmem:[#allocation2] sm:$0xff] %v60
  %63 = vst [vmem:[#allocation2 + $0x8] sm:$0xff] %v61
  // Predicated region
  $region14: #{graph_convolution.2} parent=0 // pred_check
    %p64 = pneg %p11
  $region15: #{graph_convolution.2} parent=0 // pred_check_branch
    %66 = sbr.rel (%p64) target = $region17
  $region16: #{graph_convolution.2} parent=0 // pred_region
    %v67 = vld [vmem:[#allocation2] sm:$0xff]
    %v68 = vld [vmem:[#allocation2 + $0x8] sm:$0xff]
    %v69 = vpack.c.bf16 %v67, %v67
    %v70 = vpack.c.bf16 %v68, %v68
    %71 = vst [vmem:[%s2] sm:$0xf] %v69
    %72 = vst [vmem:[%s2 + $0x4] sm:$0xf] %v70
  $region17: #{graph_convolution.2} parent=0 // pred_fallthru
    _
  // Predicated region
  $region18: #{graph_convolution.2} parent=0 // pred_check
    _
  $region19: #{graph_convolution.2} parent=0 // pred_check_branch
    %74 = sbr.rel (0) target = $region21
  $region20: #{graph_convolution.2} parent=0 // pred_region
    _
  $region21: #{graph_convolution.2} parent=0 // pred_fallthru
    _
  // Predicated region
  $region22: #{graph_convolution.2} parent=0 // pred_check
    _
  $region23: #{graph_convolution.2} parent=0 // pred_check_branch
    %76 = sbr.rel (0) target = $region25
  $region24: #{graph_convolution.2} parent=0 // pred_region
    _
  $region25: #{graph_convolution.2} parent=0 // pred_fallthru
    _

// kernel: graph_convolution.3
$region0: #{graph_convolution.3}
  #allocation0 [shape = 'u32[]', space=smem, size = 0x4, offset = 0x4, fixed_abs, tag = 'smem constant byte address 0x4 - core index']
  #allocation1 [shape = 'u32[72,128]{1,0:T(1,128)}', space=vmem, size = 0x9000, scoped, tag = 'internal scratch']
  #allocation2 [shape = 'f32[16,128]{1,0:T(8,128)}', space=vmem, size = 0x2000, scoped, tag = 'scratch operand']
  %s0 = inlined_call_operand.vmem [shape: bf16[16,128], index: 0, kind: input, shape index: {}]
  %s1 = inlined_call_operand.vmem [shape: bf16[128,128], index: 1, kind: input, shape index: {}]
  %s2 = inlined_call_operand.vmem [shape: f32[1,128], index: 2, kind: input, shape index: {}]
  %s3 = inlined_call_operand.hbm [shape: f32[16,128], index: 3, kind: output, shape index: {}]
  %s4 = sld [smem:[#allocation0]]
  $region30: #{graph_convolution.3} parent=0
    _
  %s6 = ssub.s32 1, %s4
  %s7 = scalar_select 0, %s6, %s4
  $region1: #{graph_convolution.3} parent=0
    #allocation3 [shape = 'u8[8192]{0}', space=vmem, size = 0x2000, scoped, tag = 'output window, operand 0, single buffered']
    #allocation4 [shape = 's32[1]{0}', space=sflag, size = 0x4, scoped, tag = 'scoped memory for graph_convolution.3']
    %8 = vsyncpa [#allocation4], 0
    // Predicated region
    $region2: #{graph_convolution.3} parent=1 // pred_check
      _
    $region3: #{graph_convolution.3} parent=1 // pred_check_branch
      %10 = sbr.rel (0) target = $region5
    $region4: #{graph_convolution.3} parent=1 // pred_region
      _
    $region5: #{graph_convolution.3} parent=1 // pred_fallthru
      _
    // Predicated region
    $region6: #{graph_convolution.3} parent=1 // pred_check
      _
    $region7: #{graph_convolution.3} parent=1 // pred_check_branch
      %12 = sbr.rel (0) target = $region9
    $region8: #{graph_convolution.3} parent=1 // pred_region
      _
    $region9: #{graph_convolution.3} parent=1 // pred_fallthru
      _
    // Predicated region
    $region10: #{graph_convolution.3} parent=1 // pred_check
      _
    $region11: #{graph_convolution.3} parent=1 // pred_check_branch
      %14 = sbr.rel (0) target = $region13
    $region12: #{graph_convolution.3} parent=1 // pred_region
      _
    $region13: #{graph_convolution.3} parent=1 // pred_fallthru
      _
    %p15 = scmp.eq.s32.totalorder 0, 0
    // Predicated region
    $region14: #{graph_convolution.3} parent=1 // pred_check
      %p16 = pneg %p15
    $region15: #{graph_convolution.3} parent=1 // pred_check_branch
      %18 = sbr.rel (%p16) target = $region17
    $region16: #{graph_convolution.3} parent=1 // pred_region
      %19 = vst [vmem:[#allocation2] sm:$0xff] 0.0
      %20 = vst [vmem:[#allocation2 + $0x8] sm:$0xff] 0.0
    $region17: #{graph_convolution.3} parent=1 // pred_fallthru
      _
    %v21 = vld [vmem:[#allocation2] sm:$0xff]
    %v22 = vld [vmem:[#allocation2 + $0x8] sm:$0xff]
    %v23 = vld [vmem:[%s0] sm:$0xf]
    %v24 = vld [vmem:[%s0 + $0x4] sm:$0xf]
    %v25 = vld [vmem:[%s1] sm:$0xf]
    %v26 = vld [vmem:[%s1 + $0x4] sm:$0xf]
    %v27 = vld [vmem:[%s1 + $0x8] sm:$0xf]
    %v28 = vld [vmem:[%s1 + $0xc] sm:$0xf]
    %v29 = vld [vmem:[%s1 + $0x10] sm:$0xf]
    %v30 = vld [vmem:[%s1 + $0x14] sm:$0xf]
    %v31 = vld [vmem:[%s1 + $0x18] sm:$0xf]
    %v32 = vld [vmem:[%s1 + $0x1c] sm:$0xf]
    %v33 = vld [vmem:[%s1 + $0x20] sm:$0xf]
    %v34 = vld [vmem:[%s1 + $0x24] sm:$0xf]
    %v35 = vld [vmem:[%s1 + $0x28] sm:$0xf]
    %v36 = vld [vmem:[%s1 + $0x2c] sm:$0xf]
    %v37 = vld [vmem:[%s1 + $0x30] sm:$0xf]
    %v38 = vld [vmem:[%s1 + $0x34] sm:$0xf]
    %v39 = vld [vmem:[%s1 + $0x38] sm:$0xf]
    %v40 = vld [vmem:[%s1 + $0x3c] sm:$0xf]
    %v43 = vunpack.c.l.b16 %v23
    %v44 = vunpack.c.l.b16 %v24
    %v45 = vpack.c.b16 %v44, %v43
    %v63 = vunpack.c.l.b16 %v25
    %v64 = vunpack.c.l.b16 %v26
    %v65 = vunpack.c.l.b16 %v27
    %v66 = vunpack.c.l.b16 %v28
    %v67 = vunpack.c.l.b16 %v29
    %v68 = vunpack.c.l.b16 %v30
    %v69 = vunpack.c.l.b16 %v31
    %v70 = vunpack.c.l.b16 %v32
    %v71 = vunpack.c.l.b16 %v33
    %v72 = vunpack.c.l.b16 %v34
    %v73 = vunpack.c.l.b16 %v35
    %v74 = vunpack.c.l.b16 %v36
    %v75 = vunpack.c.l.b16 %v37
    %v76 = vunpack.c.l.b16 %v38
    %v77 = vunpack.c.l.b16 %v39
    %v78 = vunpack.c.l.b16 %v40
    %v79 = vpack.c.b16 %v64, %v63
    %v80 = vpack.c.b16 %v66, %v65
    %v81 = vpack.c.b16 %v68, %v67
    %v82 = vpack.c.b16 %v70, %v69
    %v83 = vpack.c.b16 %v72, %v71
    %v84 = vpack.c.b16 %v74, %v73
    %v85 = vpack.c.b16 %v76, %v75
    %v86 = vpack.c.b16 %v78, %v77
    %95 = vmatpush.bf16.msra.mxu0 %v86
    %96 = vmatpush.bf16.msra.mxu0 %v85
    %97 = vmatpush.bf16.msra.mxu0 %v84
    %98 = vmatpush.bf16.msra.mxu0 %v83
    %99 = vmatpush.bf16.msra.mxu0 %v82
    %100 = vmatpush.bf16.msra.mxu0 %v81
    %101 = vmatpush.bf16.msra.mxu0 %v80
    %102 = vmatpush.bf16.msra.mxu0 %v79
    %103 = vmatmul.bf16.gmra.mxu0 %v45
    %v104 = vpop.f32.mrf.mxu0
    %v105 = vadd.f32 0.0, %v104
    %v106 = vpop.f32.mrf.mxu0
    %v107 = vadd.f32 0.0, %v106
    %108 = vdwg.mxu0
    %v109 = vadd.f32 %v21, %v105
    %v110 = vadd.f32 %v22, %v107
    %111 = vst [vmem:[#allocation2] sm:$0xff] %v109
    %112 = vst [vmem:[#allocation2 + $0x8] sm:$0xff] %v110
    // Predicated region
    $region18: #{graph_convolution.3} parent=1 // pred_check
      %p113 = pneg %p15
    $region19: #{graph_convolution.3} parent=1 // pred_check_branch
      %115 = sbr.rel (%p113) target = $region21
    $region20: #{graph_convolution.3} parent=1 // pred_region
      %v116 = vld [vmem:[#allocation2] sm:$0xff]
      %v117 = vld [vmem:[#allocation2 + $0x8] sm:$0xff]
      %v118 = vld [vmem:[%s2] sm:$0x1]
      %v120 = vperm.slane %v118, 0
      %v122 = vadd.f32 %v116, %v120
      %v123 = vadd.f32 %v117, %v120
      %124 = vst [vmem:[#allocation3] sm:$0xff] %v122
      %125 = vst [vmem:[#allocation3 + $0x8] sm:$0xff] %v123
    $region21: #{graph_convolution.3} parent=1 // pred_fallthru
      _
    // Predicated region
    $region22: #{graph_convolution.3} parent=1 // pred_check
      _
    $region23: #{graph_convolution.3} parent=1 // pred_check_branch
      %127 = sbr.rel (0) target = $region25
    $region24: #{graph_convolution.3} parent=1 // pred_region
      %129 = vsyncadd [#allocation4], 0
      %s130 = sshll.u32 [#allocation3], 4
      %s131 = int_to_ptr.vmem [resolvable:$true] %s130
      %s132 = sshll.u32 %s3, 4
      %s133 = int_to_ptr.hbm [resolvable:$true] %s132
      %138 = dma.vmem_to_hbm [thread:$0]  %s131, 256, %s133, [#allocation4], 128, 128, 8
    $region25: #{graph_convolution.3} parent=1 // pred_fallthru
      _
    // Predicated region
    $region26: #{graph_convolution.3} parent=1 // pred_check
      _
    $region27: #{graph_convolution.3} parent=1 // pred_check_branch
      %140 = sbr.rel (0) target = $region29
    $region28: #{graph_convolution.3} parent=1 // pred_region
      %142 = dma.done [#allocation4], 256
    $region29: #{graph_convolution.3} parent=1 // pred_fallthru
      _
    %143 = vsyncpa [#allocation4], 1

</llo_original>
